<compile_context>
chip_gen: v5e
topology: v5e:2x2
jax: 0.10.0
libtpu: 0.0.40
codegen_flags: <defaults>
</compile_context>

<pallas_src>
import numpy as np
import jax
import jax.numpy as jnp
from jax.experimental import pallas as pl
from jax.experimental.pallas import tpu as pltpu

N_HDR = 4        # N_HDR_dims
N_DEPTH_H = 4    # N_depth_H
N_ENC = 94       # N_enc_dims

_SUB = 8          # sublane padding of the (tiny) feature axis
_LANE = 128       # lane granularity of the batch axis
_MBLK_MAX = 8192  # max batch rows (lanes) per grid step


# --------------------------------- kernel ------------------------------------
def hae_kernel(w_ref, b_ref, x_ref, o_ref):
    """y^T[j, m] = sum_i w[j, i] * x^T[i, m] + b[j]   (pure VPU, f32)."""
    x = x_ref[...]                                   # (8, Mblk) f32, batch on lanes
    w = w_ref[...]                                   # (8, 8)    f32, = W_eff^T padded
    acc = w[:, 0:1] * x[0:1, :]                      # (8,1)*(1,Mblk) -> (8,Mblk)
    for i in range(1, N_HDR):                        # static unroll: 4 mul-adds total
        acc = acc + w[:, i:i + 1] * x[i:i + 1, :]
    o_ref[...] = (acc + b_ref[...]).astype(o_ref.dtype)


# ------------------------- one-time parameter prep ----------------------------
def prepare_hae_params(p):
    """Collapse the affine chain into a single 4x4 map, in kernel layout."""
    f = np.float32
    w = np.asarray(p['w_enc'], f).T                  # (4, 94)
    b = np.asarray(p['b_enc'], f)                    # (94,)
    w_pw = np.asarray(p['w_pw'], f)
    b_pw = np.asarray(p['b_pw'], f)
    for i in range(N_DEPTH_H):
        w = w @ w_pw[i].T
        b = b @ w_pw[i].T + b_pw[i]
    w_dec_t = np.asarray(p['w_dec'], f).T            # (94, 4)
    w = w @ w_dec_t                                  # (4, 4)  W_eff
    b = b @ w_dec_t + np.asarray(p['b_dec'], f)      # (4,)    b_eff
    # Kernel layout (transposed, sublane-padded): w_k[j, i] = W_eff[i, j].
    w_k = np.zeros((_SUB, _SUB), f)
    w_k[:N_HDR, :N_HDR] = w.T
    b_k = np.zeros((_SUB, 1), f)
    b_k[:N_HDR, 0] = b
    return {'w': jnp.asarray(w_k), 'b': jnp.asarray(b_k)}


# --------------------------------- wrapper -----------------------------------
def _round_up(v, m):
    return -(-v // m) * m


def hae_forward(x, prep):
    """x: (..., N_HDR) float32.  Returns forward(x) with shape (..., N_HDR)."""
    orig_shape = x.shape
    assert orig_shape[-1] == N_HDR
    M = int(np.prod(orig_shape[:-1]))
    x2 = x.reshape(M, N_HDR).astype(jnp.float32)

    # Batch-on-lanes tile: >=128, multiple of 128, capped at _MBLK_MAX, and
    # small enough that large inputs still get >= ~4 grid steps.
    mblk = min(_MBLK_MAX, max(_LANE, _round_up(-(-M // 4), _LANE)))
    m_pad = _round_up(max(M, 1), mblk)

    # x^T, lane-dense: (8, M_pad). Padded rows/cols are never consumed.
    xt = jnp.zeros((_SUB, m_pad), jnp.float32).at[:N_HDR, :M].set(x2.T)

    out = pl.pallas_call(
        hae_kernel,
        out_shape=jax.ShapeDtypeStruct((_SUB, m_pad), jnp.float32),
        grid_spec=pltpu.PrefetchScalarGridSpec(
            num_scalar_prefetch=0,
            grid=(m_pad // mblk,),
            in_specs=[
                pl.BlockSpec((_SUB, _SUB), lambda m: (0, 0)),   # W_eff^T (padded)
                pl.BlockSpec((_SUB, 1), lambda m: (0, 0)),      # b_eff   (padded)
                pl.BlockSpec((_SUB, mblk), lambda m: (0, m)),   # x^T tile
            ],
            out_specs=pl.BlockSpec((_SUB, mblk), lambda m: (0, m)),
        ),
        compiler_params=pltpu.CompilerParams(
            dimension_semantics=("parallel",),
        ),
    )(prep['w'], prep['b'], xt)

    return out[:N_HDR, :M].T.reshape(orig_shape)


# ------------------------- deterministic parameters --------------------------
def init_params(key):
    k = jax.random.split(key, 6)
    f = jnp.float32
    return {
        # PyTorch nn.Linear convention: weight is (out_features, in_features)
        'w_enc': 0.3 * jax.random.normal(k[0], (N_ENC, N_HDR), f),
        'b_enc': 0.05 * jax.random.normal(k[1], (N_ENC,), f),
        'w_pw': 0.1 * jax.random.normal(k[2], (N_DEPTH_H, N_ENC, N_ENC), f),
        'b_pw': 0.05 * jax.random.normal(k[3], (N_DEPTH_H, N_ENC), f),
        'w_dec': 0.1 * jax.random.normal(k[4], (N_HDR, N_ENC), f),
        'b_dec': 0.05 * jax.random.normal(k[5], (N_HDR,), f),
    }


# ----------------------------- reference (numpy f32) --------------------------
def reference_forward(x, p):
    f = np.float32
    h = np.asarray(x, f)
    h = h @ np.asarray(p['w_enc'], f).T + np.asarray(p['b_enc'], f)
    for i in range(N_DEPTH_H):
        h = h @ np.asarray(p['w_pw'][i], f).T + np.asarray(p['b_pw'][i], f)
    return h @ np.asarray(p['w_dec'], f).T + np.asarray(p['b_dec'], f)


# ----------------------------------- main -------------------------------------
if __name__ == "__main__":
    key = jax.random.PRNGKey(0)
    pkey, xkey = jax.random.split(key)
    params = init_params(pkey)
    prep = prepare_hae_params(params)   # one-time per model

    B, S = 2, 8
    x = jax.random.normal(xkey, (B, S, N_HDR), jnp.float32)

    out = hae_forward(x, prep)
    out = jax.block_until_ready(out)

    ref = reference_forward(x, params)
    assert out.shape == (B, S, N_HDR), out.shape
    np.testing.assert_allclose(np.asarray(out), ref, rtol=5e-3, atol=5e-3)

    print("KERNEL_OK")
</pallas_src>

<mosaic_0001>
module attributes {stable_mosaic.version = 11 : i64} {
  func.func @hae_kernel(%arg0: i32, %arg1: memref<8x8xf32, #tpu.memory_space<vmem>>, %arg2: memref<8x1xf32, #tpu.memory_space<vmem>>, %arg3: memref<8x128xf32, #tpu.memory_space<vmem>>, %arg4: memref<8x128xf32, #tpu.memory_space<vmem>>) attributes {dimension_semantics = [#tpu.dimension_semantics<parallel>], iteration_bounds = array<i64: 1>, scalar_prefetch = 0 : i64, scratch_operands = 0 : i64, tpu.core_type = #tpu.core_type<tc>, window_params = [{pipeline_mode = #tpu.pipeline_mode<synchronous>, transform_indices = @transform_0, window_bounds = array<i64: 8, 8>}, {pipeline_mode = #tpu.pipeline_mode<synchronous>, transform_indices = @transform_1, window_bounds = array<i64: 8, 1>}, {transform_indices = @transform_2, window_bounds = array<i64: 8, 128>}, {transform_indices = @transform_3, window_bounds = array<i64: 8, 128>}]} {
    %c0 = arith.constant 0 : index
    %c0_0 = arith.constant 0 : index
    %0 = vector.load %arg3[%c0, %c0_0] : memref<8x128xf32, #tpu.memory_space<vmem>>, vector<8x128xf32>
    %c0_1 = arith.constant 0 : index
    %c0_2 = arith.constant 0 : index
    %1 = vector.load %arg1[%c0_1, %c0_2] : memref<8x8xf32, #tpu.memory_space<vmem>>, vector<8x8xf32>
    %2 = vector.extract_strided_slice %1 {offsets = [0, 0], sizes = [8, 1], strides = [1, 1]} : vector<8x8xf32> to vector<8x1xf32>
    %3 = vector.extract_strided_slice %0 {offsets = [0, 0], sizes = [1, 128], strides = [1, 1]} : vector<8x128xf32> to vector<1x128xf32>
    %4 = vector.broadcast %2 : vector<8x1xf32> to vector<8x128xf32>
    %5 = vector.broadcast %3 : vector<1x128xf32> to vector<8x128xf32>
    %6 = arith.mulf %4, %5 : vector<8x128xf32>
    %7 = vector.extract_strided_slice %1 {offsets = [0, 1], sizes = [8, 1], strides = [1, 1]} : vector<8x8xf32> to vector<8x1xf32>
    %8 = vector.extract_strided_slice %0 {offsets = [1, 0], sizes = [1, 128], strides = [1, 1]} : vector<8x128xf32> to vector<1x128xf32>
    %9 = vector.broadcast %7 : vector<8x1xf32> to vector<8x128xf32>
    %10 = vector.broadcast %8 : vector<1x128xf32> to vector<8x128xf32>
    %11 = arith.mulf %9, %10 : vector<8x128xf32>
    %12 = arith.addf %6, %11 : vector<8x128xf32>
    %13 = vector.extract_strided_slice %1 {offsets = [0, 2], sizes = [8, 1], strides = [1, 1]} : vector<8x8xf32> to vector<8x1xf32>
    %14 = vector.extract_strided_slice %0 {offsets = [2, 0], sizes = [1, 128], strides = [1, 1]} : vector<8x128xf32> to vector<1x128xf32>
    %15 = vector.broadcast %13 : vector<8x1xf32> to vector<8x128xf32>
    %16 = vector.broadcast %14 : vector<1x128xf32> to vector<8x128xf32>
    %17 = arith.mulf %15, %16 : vector<8x128xf32>
    %18 = arith.addf %12, %17 : vector<8x128xf32>
    %19 = vector.extract_strided_slice %1 {offsets = [0, 3], sizes = [8, 1], strides = [1, 1]} : vector<8x8xf32> to vector<8x1xf32>
    %20 = vector.extract_strided_slice %0 {offsets = [3, 0], sizes = [1, 128], strides = [1, 1]} : vector<8x128xf32> to vector<1x128xf32>
    %21 = vector.broadcast %19 : vector<8x1xf32> to vector<8x128xf32>
    %22 = vector.broadcast %20 : vector<1x128xf32> to vector<8x128xf32>
    %23 = arith.mulf %21, %22 : vector<8x128xf32>
    %24 = arith.addf %18, %23 : vector<8x128xf32>
    %c0_3 = arith.constant 0 : index
    %c0_4 = arith.constant 0 : index
    %25 = vector.load %arg2[%c0_3, %c0_4] : memref<8x1xf32, #tpu.memory_space<vmem>>, vector<8x1xf32>
    %26 = vector.broadcast %25 : vector<8x1xf32> to vector<8x128xf32>
    %27 = arith.addf %24, %26 : vector<8x128xf32>
    %c0_5 = arith.constant 0 : index
    %c0_6 = arith.constant 0 : index
    %28 = vector.load %arg4[%c0_5, %c0_6] : memref<8x128xf32, #tpu.memory_space<vmem>>, vector<8x128xf32>
    tpu.vector_store %arg4[%c0_5, %c0_6], %27 {strides = array<i32>} : memref<8x128xf32, #tpu.memory_space<vmem>>, vector<8x128xf32>,
    return
  }
  func.func @transform_0(%arg0: i32) -> (i32, i32) {
    %c0_i32 = arith.constant 0 : i32
    %c0_i32_0 = arith.constant 0 : i32
    %c0_i32_1 = arith.constant 0 : i32
    return %c0_i32, %c0_i32_0 : i32, i32
  }
  func.func @transform_1(%arg0: i32) -> (i32, i32) {
    %c0_i32 = arith.constant 0 : i32
    %c0_i32_0 = arith.constant 0 : i32
    %c0_i32_1 = arith.constant 0 : i32
    return %c0_i32, %c0_i32_0 : i32, i32
  }
  func.func @transform_2(%arg0: i32) -> (i32, i32) {
    %c0_i32 = arith.constant 0 : i32
    %c0_i32_0 = arith.constant 0 : i32
    return %c0_i32, %arg0 : i32, i32
  }
  func.func @transform_3(%arg0: i32) -> (i32, i32) {
    %c0_i32 = arith.constant 0 : i32
    %c0_i32_0 = arith.constant 0 : i32
    return %c0_i32, %arg0 : i32, i32
  }
}

</mosaic_0001>

<llo_original>
// kernel: tpu_custom_call.1
$region0: #{tpu_custom_call.1}
  #allocation0 [shape = 'u32[]', space=smem, size = 0x4, offset = 0x4, fixed_abs, tag = 'smem constant byte address 0x4 - core index']
  #allocation1 [shape = 'u32[72,128]{1,0:T(1,128)}', space=vmem, size = 0x9000, scoped, tag = 'internal scratch']
  %s0 = inlined_call_operand.vmem [shape: f32[8,8], index: 0, kind: input, shape index: {}]
  %s1 = inlined_call_operand.vmem [shape: f32[8,1], index: 1, kind: input, shape index: {}]
  %s2 = inlined_call_operand.hbm [shape: f32[8,128], index: 2, kind: input, shape index: {}]
  %s3 = inlined_call_operand.hbm [shape: f32[8,128], index: 3, kind: output, shape index: {}]
  %s4 = sld [smem:[#allocation0]]
  $region26: #{tpu_custom_call.1} parent=0
    _
  %s6 = ssub.s32 1, %s4
  %s7 = scalar_select 0, %s6, %s4
  $region1: #{tpu_custom_call.1} parent=0
    #allocation2 [shape = 'u8[4096]{0}', space=vmem, size = 0x1000, scoped, tag = 'input window, operand 2, single buffered']
    #allocation3 [shape = 's32[1]{0}', space=sflag, size = 0x4, scoped, tag = 'scoped memory for tpu_custom_call.1']
    #allocation4 [shape = 's32[1]{0}', space=sflag, size = 0x4, scoped, tag = 'scoped memory for tpu_custom_call.1']
    #allocation5 [shape = 'u8[4096]{0}', space=vmem, size = 0x1000, scoped, tag = 'output window, operand 0, single buffered']
    %8 = vsyncpa [#allocation3], 0
    %9 = vsyncpa [#allocation4], 0
    // Predicated region
    $region2: #{tpu_custom_call.1} parent=1 // pred_check
      _
    $region3: #{tpu_custom_call.1} parent=1 // pred_check_branch
      %11 = sbr.rel (0) target = $region5
    $region4: #{tpu_custom_call.1} parent=1 // pred_region
      _
    $region5: #{tpu_custom_call.1} parent=1 // pred_fallthru
      _
    // Predicated region
    $region6: #{tpu_custom_call.1} parent=1 // pred_check
      _
    $region7: #{tpu_custom_call.1} parent=1 // pred_check_branch
      %13 = sbr.rel (0) target = $region9
    $region8: #{tpu_custom_call.1} parent=1 // pred_region
      _
    $region9: #{tpu_custom_call.1} parent=1 // pred_fallthru
      _
    // Predicated region
    $region10: #{tpu_custom_call.1} parent=1 // pred_check
      _
    $region11: #{tpu_custom_call.1} parent=1 // pred_check_branch
      %15 = sbr.rel (0) target = $region13
    $region12: #{tpu_custom_call.1} parent=1 // pred_region
      %17 = vsyncadd [#allocation3], 0
      %s19 = sshll.u32 %s2, 4
      %s20 = int_to_ptr.hbm [resolvable:$true] %s19
      %s21 = sshll.u32 [#allocation2], 4
      %s22 = int_to_ptr.vmem [resolvable:$true] %s21
      %24 = dma.hbm_to_vmem [thread:$0]  %s20, 128, %s22, [#allocation3]
    $region13: #{tpu_custom_call.1} parent=1 // pred_fallthru
      _
    // Predicated region
    $region14: #{tpu_custom_call.1} parent=1 // pred_check
      _
    $region15: #{tpu_custom_call.1} parent=1 // pred_check_branch
      %26 = sbr.rel (0) target = $region17
    $region16: #{tpu_custom_call.1} parent=1 // pred_region
      %28 = dma.done [#allocation3], 128
    $region17: #{tpu_custom_call.1} parent=1 // pred_fallthru
      _
    %v29 = vld [vmem:[#allocation2] sm:$0xff]
    %v30 = vld [vmem:[%s0] sm:$0xff]
    %32 = vset.pattern.permute.xlu0 0
    %33 = vperm.xlu0 %32, %v30
    %v34 = vpop.permute.xlu0 %33
    %v36 = vperm.slane %v29, 0
    %v37 = vmul.f32 %v34, %v36
    %38 = vset.pattern.permute.xlu0 1
    %39 = vperm.xlu0 %38, %v30
    %v40 = vpop.permute.xlu0 %39
    %v42 = vperm.slane %v29, 1
    %v43 = vmul.f32 %v40, %v42
    %v44 = vadd.f32 %v37, %v43
    %45 = vset.pattern.permute.xlu0 2
    %46 = vperm.xlu0 %45, %v30
    %v47 = vpop.permute.xlu0 %46
    %v49 = vperm.slane %v29, 2
    %v50 = vmul.f32 %v47, %v49
    %v51 = vadd.f32 %v44, %v50
    %52 = vset.pattern.permute.xlu0 3
    %53 = vperm.xlu0 %52, %v30
    %v54 = vpop.permute.xlu0 %53
    %v56 = vperm.slane %v29, 3
    %v57 = vmul.f32 %v54, %v56
    %v58 = vadd.f32 %v51, %v57
    %v59 = vld [vmem:[%s1] sm:$0xff]
    %61 = vset.pattern.permute.xlu0 0
    %62 = vperm.xlu0 %61, %v59
    %v63 = vpop.permute.xlu0 %62
    %v65 = vadd.f32 %v58, %v63
    %66 = vst [vmem:[#allocation5] sm:$0xff] %v65
    // Predicated region
    $region18: #{tpu_custom_call.1} parent=1 // pred_check
      _
    $region19: #{tpu_custom_call.1} parent=1 // pred_check_branch
      %68 = sbr.rel (0) target = $region21
    $region20: #{tpu_custom_call.1} parent=1 // pred_region
      %70 = vsyncadd [#allocation4], 0
      %s72 = sshll.u32 [#allocation5], 4
      %s73 = int_to_ptr.vmem [resolvable:$true] %s72
      %s74 = sshll.u32 %s3, 4
      %s75 = int_to_ptr.hbm [resolvable:$true] %s74
      %77 = dma.vmem_to_hbm [thread:$0]  %s73, 128, %s75, [#allocation4]
    $region21: #{tpu_custom_call.1} parent=1 // pred_fallthru
      _
    // Predicated region
    $region22: #{tpu_custom_call.1} parent=1 // pred_check
      _
    $region23: #{tpu_custom_call.1} parent=1 // pred_check_branch
      %79 = sbr.rel (0) target = $region25
    $region24: #{tpu_custom_call.1} parent=1 // pred_region
      %81 = dma.done [#allocation4], 128
    $region25: #{tpu_custom_call.1} parent=1 // pred_fallthru
      _
    %82 = vsyncpa [#allocation3], 1
    %83 = vsyncpa [#allocation4], 1

</llo_original>
